<compile_context>
chip_gen: v5e
topology: v5e:2x2
jax: 0.10.0
libtpu: 0.0.40
codegen_flags: <defaults>
</compile_context>

<pallas_src>
import jax
import jax.numpy as jnp
from jax.experimental import pallas as pl
from jax.experimental.pallas import tpu as pltpu


# ----------------------------------------------------------------------------
# Fused sin/cos with a shared 3-term Cody–Waite range reduction (all f32).
# ----------------------------------------------------------------------------
_TWO_OVER_PI = 0.6366197723675814
# pi/2 split so that n * _PIO2_0 is exact in f32 for |n| < 2^17.
_PIO2_0 = 1.5703125
_PIO2_1 = 4.837512969970703125e-4
_PIO2_2 = 7.54978995489188e-8
# Cephes sinf/cosf minimax coefficients on [-pi/4, pi/4].
_S1, _S2, _S3 = -1.6666654611e-1, 8.3321608736e-3, -1.9515295891e-4
_C1, _C2, _C3 = 4.166664568298827e-2, -1.388731625493765e-3, 2.443315711809948e-5


def _sincos(x):
    """Returns (sin(x), cos(x)) sharing one range reduction / quadrant calc."""
    n = jnp.round(x * _TWO_OVER_PI)               # quadrant count (float)
    r = x - n * _PIO2_0                           # Cody–Waite reduction
    r = r - n * _PIO2_1
    r = r - n * _PIO2_2
    r2 = r * r
    sin_r = r + r * r2 * (_S1 + r2 * (_S2 + r2 * _S3))
    cos_r = 1.0 - 0.5 * r2 + r2 * r2 * (_C1 + r2 * (_C2 + r2 * _C3))
    q = n.astype(jnp.int32)
    swap = (q & 1) == 1                            # odd quadrant -> swap
    sin_m = jnp.where(swap, cos_r, sin_r)
    cos_m = jnp.where(swap, sin_r, cos_r)
    sin_x = jnp.where((q & 2) == 2, -sin_m, sin_m)        # q in {2,3}
    cos_x = jnp.where(((q + 1) & 2) == 2, -cos_m, cos_m)  # q in {1,2}
    return sin_x, cos_x


# ----------------------------------------------------------------------------
# Kernels.
# ----------------------------------------------------------------------------
def _rope_kernel_split(inv_ref, pos_ref, cos_ref, sin_ref):
    """Row-tile kernel, separate cos / sin outputs (dim > 64).

    inv_ref: (1, half)  f32    inverse frequencies (half = dim // 2).
    pos_ref: (tR, 1)    int32  flattened (batch*seq) position ids.
    cos_ref: (tR, dim)  out dtype
    sin_ref: (tR, dim)  out dtype
    """
    pos = pos_ref[...].astype(jnp.float32)         # (tR, 1), cheap VPU convert
    freqs = pos * inv_ref[...]                     # (tR, half) broadcast mul
    s, c = _sincos(freqs)                          # trig at half width only
    # Duplicate lanes (XLU) and emit ONE full-width lane-dense store each.
    cos_ref[...] = jnp.concatenate([c, c], axis=-1).astype(cos_ref.dtype)
    sin_ref[...] = jnp.concatenate([s, s], axis=-1).astype(sin_ref.dtype)


def _rope_kernel_fused(inv_ref, pos_ref, out_ref):
    """Row-tile kernel, single fused cos||sin output (dim <= 64).

    out_ref: (tR, 2*dim) = [cos(emb) | sin(emb)] — widest lane-dense store
    available for small head dims; the wrapper splits it.
    """
    pos = pos_ref[...].astype(jnp.float32)
    freqs = pos * inv_ref[...]                     # (tR, half)
    s, c = _sincos(freqs)
    out_ref[...] = jnp.concatenate([c, c, s, s], axis=-1).astype(out_ref.dtype)


# ----------------------------------------------------------------------------
# Wrapper (mirrors _RotaryEmbedding.forward(x, position_ids) -> (cos, sin)).
# ----------------------------------------------------------------------------
def rotary_embedding(x, position_ids, dim, base=100000.0, tile_rows=2048):
    B, S = position_ids.shape
    half = dim // 2
    out_dtype = x.dtype

    # Lazily-built inv_freq of the PyTorch module (half width only — the
    # kernel performs the cat([freqs, freqs]) lane duplication itself).
    inv_half = (1.0 / (base ** (jnp.arange(0, dim, 2, dtype=jnp.float32) / dim))
                ).reshape(1, half)

    # Flatten (B, S) -> rows; positions stay int32, sublane-major (rows, 1).
    rows = B * S
    pos = position_ids.astype(jnp.int32).reshape(rows, 1)

    # Row-tile size: default 2048 rows, clamped for tiny/decode shapes and
    # kept a multiple of 8 (sublane).  VMEM @ tR=2048, dim=128, f32 outputs:
    #   outputs 2 x 2 bufs x 2048*128*4 B = 4 MiB, lane-padded pos blocks
    #   2 x 2048*128*4 B = 2 MiB, intermediates a few MiB -> well under the
    #   16/32 MiB scoped defaults on every generation (incl. v7x 64 MiB).
    padded_rows_min = ((rows + 7) // 8) * 8
    tR = max(8, min(int(tile_rows), padded_rows_min))
    tR = ((tR + 7) // 8) * 8
    n_tiles = pl.cdiv(rows, tR)
    padded = n_tiles * tR
    if padded != rows:
        # Padded tail rows compute cos(0)=1 / sin(0)=0 and are sliced off.
        pos = jnp.pad(pos, ((0, padded - rows), (0, 0)))

    in_specs = [
        pl.BlockSpec((1, half), lambda r: (0, 0)),   # inv_freq (shared)
        pl.BlockSpec((tR, 1), lambda r: (r, 0)),     # positions (sublane-major)
    ]
    compiler_params = pltpu.CompilerParams(dimension_semantics=("parallel",))

    if dim <= 64:
        # Single fused cos||sin output: one (tR, 2*dim) store instead of two
        # lane-masked (tR, dim) stores.  Wrapper split costs one extra HBM
        # pass but removes the masked-store penalty in the kernel.
        out = pl.pallas_call(
            _rope_kernel_fused,
            grid=(n_tiles,),
            in_specs=in_specs,
            out_specs=pl.BlockSpec((tR, 2 * dim), lambda r: (r, 0)),
            out_shape=jax.ShapeDtypeStruct((padded, 2 * dim), out_dtype),
            compiler_params=compiler_params,
        )(inv_half, pos)
        cos = out[:rows, :dim].reshape(B, S, dim)
        sin = out[:rows, dim:].reshape(B, S, dim)
    else:
        cos, sin = pl.pallas_call(
            _rope_kernel_split,
            grid=(n_tiles,),
            in_specs=in_specs,
            out_specs=[
                pl.BlockSpec((tR, dim), lambda r: (r, 0)),
                pl.BlockSpec((tR, dim), lambda r: (r, 0)),
            ],
            out_shape=[
                jax.ShapeDtypeStruct((padded, dim), out_dtype),
                jax.ShapeDtypeStruct((padded, dim), out_dtype),
            ],
            compiler_params=compiler_params,
        )(inv_half, pos)
        cos = cos[:rows].reshape(B, S, dim)
        sin = sin[:rows].reshape(B, S, dim)
    return cos, sin


if __name__ == "__main__":
    key = jax.random.PRNGKey(0)
    B, S, dim = 2, 8, 32
    base = 100000.0

    # x is only used for its dtype in the original module.
    x = jax.random.normal(key, (B, S, dim), dtype=jnp.float32)
    position_ids = jnp.broadcast_to(
        jnp.arange(S, dtype=jnp.int32)[None, :], (B, S))

    cos, sin = rotary_embedding(x, position_ids, dim, base=base)
    jax.block_until_ready((cos, sin))

    # Pure-JAX reference (same math as the PyTorch module).
    inv_freq = 1.0 / (base ** (jnp.arange(0, dim, 2, dtype=jnp.float32) / dim))
    freqs = position_ids.astype(jnp.float32)[:, :, None] * inv_freq[None, None, :]
    emb = jnp.concatenate([freqs, freqs], axis=-1)
    assert cos.shape == (B, S, dim) and sin.shape == (B, S, dim)
    assert cos.dtype == x.dtype and sin.dtype == x.dtype
    assert jnp.allclose(cos, jnp.cos(emb).astype(x.dtype), atol=1e-5)
    assert jnp.allclose(sin, jnp.sin(emb).astype(x.dtype), atol=1e-5)

    # A larger / non-multiple shape exercising tiling, tail padding and the
    # lane-dense split-output (dim >= 128) path with bf16 outputs.
    B2, S2, dim2 = 3, 1000, 128
    x2 = jnp.zeros((B2, S2, dim2), dtype=jnp.bfloat16)
    pos2 = jnp.broadcast_to(jnp.arange(S2, dtype=jnp.int32)[None, :], (B2, S2))
    cos2, sin2 = rotary_embedding(x2, pos2, dim2, base=base, tile_rows=2048)
    jax.block_until_ready((cos2, sin2))
    inv2 = 1.0 / (base ** (jnp.arange(0, dim2, 2, dtype=jnp.float32) / dim2))
    f2 = pos2.astype(jnp.float32)[:, :, None] * inv2[None, None, :]
    emb2 = jnp.concatenate([f2, f2], axis=-1)
    assert cos2.shape == (B2, S2, dim2) and cos2.dtype == jnp.bfloat16
    assert jnp.allclose(cos2.astype(jnp.float32),
                        jnp.cos(emb2).astype(jnp.bfloat16).astype(jnp.float32),
                        atol=1e-2)
    assert jnp.allclose(sin2.astype(jnp.float32),
                        jnp.sin(emb2).astype(jnp.bfloat16).astype(jnp.float32),
                        atol=1e-2)

    print("KERNEL_OK")
</pallas_src>

<mosaic_0001>
module attributes {stable_mosaic.version = 11 : i64} {
  func.func @_rope_kernel_fused(%arg0: i32, %arg1: memref<1x16xf32, #tpu.memory_space<vmem>>, %arg2: memref<16x1xi32, #tpu.memory_space<vmem>>, %arg3: memref<16x64xf32, #tpu.memory_space<vmem>>) attributes {dimension_semantics = [#tpu.dimension_semantics<parallel>], iteration_bounds = array<i64: 1>, scalar_prefetch = 0 : i64, scratch_operands = 0 : i64, tpu.core_type = #tpu.core_type<tc>, window_params = [{pipeline_mode = #tpu.pipeline_mode<synchronous>, transform_indices = @transform_0, window_bounds = array<i64: 1, 16>}, {transform_indices = @transform_1, window_bounds = array<i64: 16, 1>}, {transform_indices = @transform_2, window_bounds = array<i64: 16, 64>}]} {
    %c0 = arith.constant 0 : index
    %c0_0 = arith.constant 0 : index
    %0 = vector.load %arg2[%c0, %c0_0] : memref<16x1xi32, #tpu.memory_space<vmem>>, vector<16x1xi32>
    %1 = arith.sitofp %0 : vector<16x1xi32> to vector<16x1xf32>
    %c0_1 = arith.constant 0 : index
    %c0_2 = arith.constant 0 : index
    %2 = vector.load %arg1[%c0_1, %c0_2] : memref<1x16xf32, #tpu.memory_space<vmem>>, vector<1x16xf32>
    %3 = vector.broadcast %1 : vector<16x1xf32> to vector<16x16xf32>
    %4 = vector.broadcast %2 : vector<1x16xf32> to vector<16x16xf32>
    %5 = arith.mulf %3, %4 : vector<16x16xf32>
    %cst = arith.constant 0.636619746 : f32
    %6 = vector.broadcast %cst : f32 to vector<16x16xf32>
    %7 = arith.mulf %5, %6 : vector<16x16xf32>
    %8 = math.roundeven %7 : vector<16x16xf32>
    %cst_3 = arith.constant 1.5703125 : f32
    %9 = vector.broadcast %cst_3 : f32 to vector<16x16xf32>
    %10 = arith.mulf %8, %9 : vector<16x16xf32>
    %11 = arith.subf %5, %10 : vector<16x16xf32>
    %cst_4 = arith.constant 4.83751297E-4 : f32
    %12 = vector.broadcast %cst_4 : f32 to vector<16x16xf32>
    %13 = arith.mulf %8, %12 : vector<16x16xf32>
    %14 = arith.subf %11, %13 : vector<16x16xf32>
    %cst_5 = arith.constant 7.549790e-08 : f32
    %15 = vector.broadcast %cst_5 : f32 to vector<16x16xf32>
    %16 = arith.mulf %8, %15 : vector<16x16xf32>
    %17 = arith.subf %14, %16 : vector<16x16xf32>
    %18 = arith.mulf %17, %17 : vector<16x16xf32>
    %19 = arith.mulf %17, %18 : vector<16x16xf32>
    %cst_6 = arith.constant -1.95152956E-4 : f32
    %20 = vector.broadcast %cst_6 : f32 to vector<16x16xf32>
    %21 = arith.mulf %18, %20 : vector<16x16xf32>
    %cst_7 = arith.constant 0.00833216123 : f32
    %22 = vector.broadcast %cst_7 : f32 to vector<16x16xf32>
    %23 = arith.addf %22, %21 : vector<16x16xf32>
    %24 = arith.mulf %18, %23 : vector<16x16xf32>
    %cst_8 = arith.constant -0.166666552 : f32
    %25 = vector.broadcast %cst_8 : f32 to vector<16x16xf32>
    %26 = arith.addf %25, %24 : vector<16x16xf32>
    %27 = arith.mulf %19, %26 : vector<16x16xf32>
    %28 = arith.addf %17, %27 : vector<16x16xf32>
    %cst_9 = arith.constant 5.000000e-01 : f32
    %29 = vector.broadcast %cst_9 : f32 to vector<16x16xf32>
    %30 = arith.mulf %29, %18 : vector<16x16xf32>
    %cst_10 = arith.constant 1.000000e+00 : f32
    %31 = vector.broadcast %cst_10 : f32 to vector<16x16xf32>
    %32 = arith.subf %31, %30 : vector<16x16xf32>
    %33 = arith.mulf %18, %18 : vector<16x16xf32>
    %cst_11 = arith.constant 2.44331568E-5 : f32
    %34 = vector.broadcast %cst_11 : f32 to vector<16x16xf32>
    %35 = arith.mulf %18, %34 : vector<16x16xf32>
    %cst_12 = arith.constant -0.00138873165 : f32
    %36 = vector.broadcast %cst_12 : f32 to vector<16x16xf32>
    %37 = arith.addf %36, %35 : vector<16x16xf32>
    %38 = arith.mulf %18, %37 : vector<16x16xf32>
    %cst_13 = arith.constant 0.0416666456 : f32
    %39 = vector.broadcast %cst_13 : f32 to vector<16x16xf32>
    %40 = arith.addf %39, %38 : vector<16x16xf32>
    %41 = arith.mulf %33, %40 : vector<16x16xf32>
    %42 = arith.addf %32, %41 : vector<16x16xf32>
    %43 = arith.fptosi %8 : vector<16x16xf32> to vector<16x16xi32>
    %c1_i32 = arith.constant 1 : i32
    %44 = vector.broadcast %c1_i32 : i32 to vector<16x16xi32>
    %45 = arith.andi %43, %44 : vector<16x16xi32>
    %c1_i32_14 = arith.constant 1 : i32
    %46 = vector.broadcast %c1_i32_14 : i32 to vector<16x16xi32>
    %47 = arith.cmpi eq, %45, %46 : vector<16x16xi32>
    %48 = arith.select %47, %42, %28 : vector<16x16xi1>, vector<16x16xf32>
    %49 = arith.select %47, %28, %42 : vector<16x16xi1>, vector<16x16xf32>
    %c2_i32 = arith.constant 2 : i32
    %50 = vector.broadcast %c2_i32 : i32 to vector<16x16xi32>
    %51 = arith.andi %43, %50 : vector<16x16xi32>
    %c2_i32_15 = arith.constant 2 : i32
    %52 = vector.broadcast %c2_i32_15 : i32 to vector<16x16xi32>
    %53 = arith.cmpi eq, %51, %52 : vector<16x16xi32>
    %cst_16 = arith.constant 0.000000e+00 : f32
    %54 = vector.broadcast %cst_16 : f32 to vector<16x16xf32>
    %55 = arith.subf %54, %48 : vector<16x16xf32>
    %56 = arith.select %53, %55, %48 : vector<16x16xi1>, vector<16x16xf32>
    %c1_i32_17 = arith.constant 1 : i32
    %57 = vector.broadcast %c1_i32_17 : i32 to vector<16x16xi32>
    %58 = arith.addi %43, %57 : vector<16x16xi32>
    %c2_i32_18 = arith.constant 2 : i32
    %59 = vector.broadcast %c2_i32_18 : i32 to vector<16x16xi32>
    %60 = arith.andi %58, %59 : vector<16x16xi32>
    %c2_i32_19 = arith.constant 2 : i32
    %61 = vector.broadcast %c2_i32_19 : i32 to vector<16x16xi32>
    %62 = arith.cmpi eq, %60, %61 : vector<16x16xi32>
    %cst_20 = arith.constant 0.000000e+00 : f32
    %63 = vector.broadcast %cst_20 : f32 to vector<16x16xf32>
    %64 = arith.subf %63, %49 : vector<16x16xf32>
    %65 = arith.select %62, %64, %49 : vector<16x16xi1>, vector<16x16xf32>
    %66 = tpu.concatenate %65, %65, %56, %56 in 1 : vector<16x16xf32>, vector<16x16xf32>, vector<16x16xf32>, vector<16x16xf32> -> vector<16x64xf32>
    %c0_21 = arith.constant 0 : index
    %c0_22 = arith.constant 0 : index
    %67 = vector.load %arg3[%c0_21, %c0_22] : memref<16x64xf32, #tpu.memory_space<vmem>>, vector<16x64xf32>
    tpu.vector_store %arg3[%c0_21, %c0_22], %66 {strides = array<i32>} : memref<16x64xf32, #tpu.memory_space<vmem>>, vector<16x64xf32>,
    return
  }
  func.func @transform_0(%arg0: i32) -> (i32, i32) {
    %c0_i32 = arith.constant 0 : i32
    %c0_i32_0 = arith.constant 0 : i32
    %c0_i32_1 = arith.constant 0 : i32
    return %c0_i32, %c0_i32_0 : i32, i32
  }
  func.func @transform_1(%arg0: i32) -> (i32, i32) {
    %c0_i32 = arith.constant 0 : i32
    %c0_i32_0 = arith.constant 0 : i32
    return %arg0, %c0_i32 : i32, i32
  }
  func.func @transform_2(%arg0: i32) -> (i32, i32) {
    %c0_i32 = arith.constant 0 : i32
    %c0_i32_0 = arith.constant 0 : i32
    return %arg0, %c0_i32 : i32, i32
  }
}

</mosaic_0001>

<llo_original>
// kernel: tpu_custom_call.1
$region0: #{tpu_custom_call.1}
  #allocation0 [shape = 'u32[]', space=smem, size = 0x4, offset = 0x4, fixed_abs, tag = 'smem constant byte address 0x4 - core index']
  #allocation1 [shape = 'u32[72,128]{1,0:T(1,128)}', space=vmem, size = 0x9000, scoped, tag = 'internal scratch']
  %s0 = inlined_call_operand.vmem [shape: f32[1,16], index: 0, kind: input, shape index: {}]
  %s1 = inlined_call_operand.vmem [shape: s32[16,1], index: 1, kind: input, shape index: {}]
  %s2 = inlined_call_operand.hbm [shape: f32[16,64], index: 2, kind: output, shape index: {}]
  %s3 = sld [smem:[#allocation0]]
  $region18: #{tpu_custom_call.1} parent=0
    _
  %s5 = ssub.s32 1, %s3
  %s6 = scalar_select 0, %s5, %s3
  $region1: #{tpu_custom_call.1} parent=0
    #allocation2 [shape = 'u8[8192]{0}', space=vmem, size = 0x2000, scoped, tag = 'output window, operand 0, single buffered']
    #allocation3 [shape = 's32[1]{0}', space=sflag, size = 0x4, scoped, tag = 'scoped memory for tpu_custom_call.1']
    %7 = vsyncpa [#allocation3], 0
    // Predicated region
    $region2: #{tpu_custom_call.1} parent=1 // pred_check
      _
    $region3: #{tpu_custom_call.1} parent=1 // pred_check_branch
      %9 = sbr.rel (0) target = $region5
    $region4: #{tpu_custom_call.1} parent=1 // pred_region
      _
    $region5: #{tpu_custom_call.1} parent=1 // pred_fallthru
      _
    // Predicated region
    $region6: #{tpu_custom_call.1} parent=1 // pred_check
      _
    $region7: #{tpu_custom_call.1} parent=1 // pred_check_branch
      %11 = sbr.rel (0) target = $region9
    $region8: #{tpu_custom_call.1} parent=1 // pred_region
      _
    $region9: #{tpu_custom_call.1} parent=1 // pred_fallthru
      _
    %v12 = vld [vmem:[%s1] sm:$0xff]
    %v13 = vld [vmem:[%s1 + $0x8] sm:$0xff]
    %v14 = vcvt.s32.f32 %v12
    %v15 = vcvt.s32.f32 %v13
    %v16 = vld [vmem:[%s0] sm:$0x1]
    %18 = vset.pattern.permute.xlu0 0
    %19 = vperm.xlu0 %18, %v14
    %v20 = vpop.permute.xlu0 %19
    %23 = vset.pattern.permute.xlu0 0
    %24 = vperm.xlu0 %23, %v15
    %v25 = vpop.permute.xlu0 %24
    %v28 = vperm.slane %v16, 0
    %v30 = vmul.f32 %v20, %v28
    %v31 = vmul.f32 %v25, %v28
    %v32 = vmul.f32 %v30, 0.63661975
    %v33 = vmul.f32 %v31, 0.63661975
    %v34 = vround.ne.pseudo %v32
    %v35 = vround.ne.pseudo %v33
    %v36 = vmul.f32 %v34, 1.5703125
    %v37 = vmul.f32 %v35, 1.5703125
    %v38 = vsub.f32 %v30, %v36
    %v39 = vsub.f32 %v31, %v37
    %v40 = vmul.f32 %v34, 0.0004837513
    %v41 = vmul.f32 %v35, 0.0004837513
    %v42 = vsub.f32 %v38, %v40
    %v43 = vsub.f32 %v39, %v41
    %v44 = vmul.f32 %v34, 7.54979e-08
    %v45 = vmul.f32 %v35, 7.54979e-08
    %v46 = vsub.f32 %v42, %v44
    %v47 = vsub.f32 %v43, %v45
    %v48 = vmul.f32 %v46, %v46
    %v49 = vmul.f32 %v47, %v47
    %v50 = vmul.f32 %v46, %v48
    %v51 = vmul.f32 %v47, %v49
    %v52 = vmul.f32 %v48, -0.00019515296
    %v53 = vmul.f32 %v49, -0.00019515296
    %v54 = vadd.f32 %v52, 0.008332161
    %v55 = vadd.f32 %v53, 0.008332161
    %v56 = vmul.f32 %v48, %v54
    %v57 = vmul.f32 %v49, %v55
    %v58 = vadd.f32 %v56, -0.16666655
    %v59 = vadd.f32 %v57, -0.16666655
    %v60 = vmul.f32 %v50, %v58
    %v61 = vmul.f32 %v51, %v59
    %v62 = vadd.f32 %v46, %v60
    %v63 = vadd.f32 %v47, %v61
    %v64 = vmul.f32 %v48, 0.5
    %v65 = vmul.f32 %v49, 0.5
    %v66 = vsub.f32 1.0, %v64
    %v67 = vsub.f32 1.0, %v65
    %v68 = vmul.f32 %v48, %v48
    %v69 = vmul.f32 %v49, %v49
    %v70 = vmul.f32 %v48, 2.4433157e-05
    %v71 = vmul.f32 %v49, 2.4433157e-05
    %v72 = vadd.f32 %v70, -0.0013887316
    %v73 = vadd.f32 %v71, -0.0013887316
    %v74 = vmul.f32 %v48, %v72
    %v75 = vmul.f32 %v49, %v73
    %v76 = vadd.f32 %v74, 0.041666646
    %v77 = vadd.f32 %v75, 0.041666646
    %v78 = vmul.f32 %v68, %v76
    %v79 = vmul.f32 %v69, %v77
    %v80 = vadd.f32 %v66, %v78
    %v81 = vadd.f32 %v67, %v79
    %v82 = vcvt.f32.s32.ties.to.even %v32
    %v83 = vcvt.f32.s32.ties.to.even %v33
    %v84 = vand.u32 %v82, 1
    %v85 = vand.u32 %v83, 1
    %vm86 = vcmp.eq.s32.totalorder %v84, 1
    %vm87 = vcmp.eq.s32.totalorder %v85, 1
    %v88 = vsel %vm86, %v80, %v62
    %v89 = vsel %vm87, %v81, %v63
    %v90 = vsel %vm86, %v62, %v80
    %v91 = vsel %vm87, %v63, %v81
    %v92 = vand.u32 %v82, 2
    %v93 = vand.u32 %v83, 2
    %vm94 = vcmp.eq.s32.totalorder %v92, 2
    %vm95 = vcmp.eq.s32.totalorder %v93, 2
    %v96 = vsub.f32 0.0, %v88
    %v97 = vsub.f32 0.0, %v89
    %v98 = vsel %vm94, %v96, %v88
    %v99 = vsel %vm95, %v97, %v89
    %v100 = vadd.s32 %v82, 1
    %v101 = vadd.s32 %v83, 1
    %v102 = vand.u32 %v100, 2
    %v103 = vand.u32 %v101, 2
    %vm104 = vcmp.eq.s32.totalorder %v102, 2
    %vm105 = vcmp.eq.s32.totalorder %v103, 2
    %v106 = vsub.f32 0.0, %v90
    %v107 = vsub.f32 0.0, %v91
    %v108 = vsel %vm104, %v106, %v90
    %v109 = vsel %vm105, %v107, %v91
    %112 = vrot.lane.b32.xlu0 %v108, 16
    %v113 = vpop.permute.xlu0 %112
    %114 = vrot.lane.b32.xlu0 %v109, 16
    %v115 = vpop.permute.xlu0 %114
    %120 = vrot.lane.b32.xlu0 %v98, 32
    %v121 = vpop.permute.xlu0 %120
    %122 = vrot.lane.b32.xlu0 %v99, 32
    %v123 = vpop.permute.xlu0 %122
    %126 = vrot.lane.b32.xlu0 %v98, 48
    %v127 = vpop.permute.xlu0 %126
    %128 = vrot.lane.b32.xlu0 %v99, 48
    %v129 = vpop.permute.xlu0 %128
    %vm132 = vcmask 130048
    %v133 = vsel %vm132, %v108, %v113
    %v134 = vsel %vm132, %v109, %v115
    %vm135 = vcmask 261120
    %v136 = vsel %vm135, %v133, %v121
    %v137 = vsel %vm135, %v134, %v123
    %vm138 = vcmask 392192
    %v139 = vsel %vm138, %v136, %v127
    %v140 = vsel %vm138, %v137, %v129
    %vm141 = vcmask 523264
    %142 = vst.msk [vmem:[#allocation2] sm:$0xff] %vm141, %v139
    %143 = vst.msk [vmem:[#allocation2 + $0x8] sm:$0xff] %vm141, %v140
    // Predicated region
    $region10: #{tpu_custom_call.1} parent=1 // pred_check
      _
    $region11: #{tpu_custom_call.1} parent=1 // pred_check_branch
      %145 = sbr.rel (0) target = $region13
    $region12: #{tpu_custom_call.1} parent=1 // pred_region
      %147 = vsyncadd [#allocation3], 0
      %s148 = sshll.u32 [#allocation2], 4
      %s149 = int_to_ptr.vmem [resolvable:$true] %s148
      %s150 = sshll.u32 %s2, 4
      %s151 = int_to_ptr.hbm [resolvable:$true] %s150
      %156 = dma.vmem_to_hbm [thread:$0]  %s149, 256, %s151, [#allocation3], 128, 128, 8
    $region13: #{tpu_custom_call.1} parent=1 // pred_fallthru
      _
    // Predicated region
    $region14: #{tpu_custom_call.1} parent=1 // pred_check
      _
    $region15: #{tpu_custom_call.1} parent=1 // pred_check_branch
      %158 = sbr.rel (0) target = $region17
    $region16: #{tpu_custom_call.1} parent=1 // pred_region
      %160 = dma.done [#allocation3], 256
    $region17: #{tpu_custom_call.1} parent=1 // pred_fallthru
      _
    %161 = vsyncpa [#allocation3], 1

</llo_original>
